<compile_context>
chip_gen: v6e
topology: v6e:2x2x1
jax: 0.10.0
libtpu: 0.0.40
codegen_flags: <defaults>
</compile_context>

<pallas_src>
import functools

import jax
import jax.numpy as jnp
from jax.experimental import pallas as pl
from jax.experimental.pallas import tpu as pltpu

HIDDEN = 128     # fixed by the .view(1, -1, 128) in the PyTorch forward
VOCAB = 256      # input_size (embedding vocabulary)
BATCH = 8        # small batch, f32 sublane-aligned


def encoder_gru_kernel(hidden,
                       ids_ref,   # (B, 1)   int32  token ids (VMEM)
                       h_ref,     # (B, H)   f32    previous hidden (VMEM)
                       wx_ref,    # (V, 4H)  bf16   embedding-folded x-gate weights
                       wh_ref,    # (H, 4H)  bf16   h-gate weights
                       b_ref,     # (1, 4H)  f32    packed bias [r | z | i_n | h_n]
                       out_ref):  # (B, H)   f32    new hidden (== GRU output)
    batch = ids_ref.shape[0]
    vocab = wx_ref.shape[0]

    h = h_ref[...]                                             # (B, H) f32

    # One-hot token selector built on the VPU; the MXU matmul below then IS the
    # embedding lookup *and* the x-gate projection in one shot (weights were
    # pre-multiplied by the embedding table host-side).
    onehot = (jax.lax.broadcasted_iota(jnp.int32, (batch, vocab), 1)
              == ids_ref[...]).astype(wx_ref.dtype)            # (B, V) bf16

    # Gate pre-activations, f32 accumulation: columns are [r | z | i_n | h_n].
    g = jnp.dot(onehot, wx_ref[...], preferred_element_type=jnp.float32)
    g = g + jnp.dot(h.astype(wh_ref.dtype), wh_ref[...],
                    preferred_element_type=jnp.float32)
    g = g + b_ref[...]

    # PyTorch GRU gate math (gate order r, z, n), all f32 on VPU/EUP.
    r = jax.nn.sigmoid(g[:, 0:hidden])
    z = jax.nn.sigmoid(g[:, hidden:2 * hidden])
    n = jnp.tanh(g[:, 2 * hidden:3 * hidden] + r * g[:, 3 * hidden:4 * hidden])
    h_new = (1.0 - z) * n + z * h

    out_ref[...] = h_new.astype(out_ref.dtype)


def encoder_gru_step(token_ids, h_prev, wx_folded, wh_packed, b_packed):
    """token_ids (B,) int32, h_prev (B, H) f32 -> new hidden (B, H) f32."""
    B, H = h_prev.shape
    ids2d = token_ids.reshape(B, 1).astype(jnp.int32)
    vmem = pl.BlockSpec(memory_space=pltpu.MemorySpace.VMEM)
    return pl.pallas_call(
        functools.partial(encoder_gru_kernel, H),
        out_shape=jax.ShapeDtypeStruct((B, H), jnp.float32),
        in_specs=[vmem] * 5,
        out_specs=vmem,
        # New hidden reuses h_prev's buffer (no extra output allocation/writeback).
        input_output_aliases={1: 0},
    )(ids2d, h_prev, wx_folded, wh_packed, b_packed)


def encoder_rnn_forward(params, token_ids, hidden):
    """Mirrors EncoderRNN.forward: (input, hidden) -> (output, hidden)."""
    h_prev = hidden[0]                                        # (B, H)
    h_new = encoder_gru_step(token_ids, h_prev,
                             params["wx_folded"], params["wh_packed"],
                             params["b_packed"])
    out = h_new[None, :, :]                                   # (1, B, H)
    # Single-layer, single-step GRU: output for the (only) timestep == hidden.
    return out, out


def pack_gru_params(embedding, w_ih, w_hh, b_ih, b_hh, weight_dtype=jnp.bfloat16):
    """Fold the embedding table into packed GRU weights.

    w_ih, w_hh : (3H, H) rows ordered [r, z, n] (PyTorch layout); b_ih, b_hh : (3H,).
    Returns:
      wx_folded (V, 4H): E @ [W_ir^T | W_iz^T | W_in^T | 0]   (x/embedding path)
      wh_packed (H, 4H):     [W_hr^T | W_hz^T | 0 | W_hn^T]   (hidden path)
      b_packed  (1, 4H):     [b_ir+b_hr | b_iz+b_hz | b_in | b_hn]
    The zero column blocks are intentional (i_n only from x, h_n only from h).
    """
    H = w_ih.shape[1]
    w_ih_t = w_ih.T      # (H, 3H)
    w_hh_t = w_hh.T      # (H, 3H)

    wx = jnp.zeros((H, 4 * H), jnp.float32)
    wx = wx.at[:, 0:2 * H].set(w_ih_t[:, 0:2 * H])            # r, z   (from x)
    wx = wx.at[:, 2 * H:3 * H].set(w_ih_t[:, 2 * H:3 * H])    # i_n    (from x)

    wh = jnp.zeros((H, 4 * H), jnp.float32)
    wh = wh.at[:, 0:2 * H].set(w_hh_t[:, 0:2 * H])            # r, z   (from h)
    wh = wh.at[:, 3 * H:4 * H].set(w_hh_t[:, 2 * H:3 * H])    # h_n    (from h)

    # Fold embedding: onehot(ids) @ (E @ wx) == E[ids] @ wx  (done in f32, then bf16).
    wx_folded = (embedding.astype(jnp.float32) @ wx).astype(weight_dtype)  # (V, 4H)

    b = jnp.concatenate([
        b_ih[0:2 * H] + b_hh[0:2 * H],   # fused r/z bias
        b_ih[2 * H:3 * H],               # b_in
        b_hh[2 * H:3 * H],               # b_hn (scaled by r together with h_n)
    ]).reshape(1, 4 * H)
    return wx_folded, wh.astype(weight_dtype), b.astype(jnp.float32)


def init_params(key, vocab, hidden):
    """Deterministic synthetic parameters with PyTorch-style init."""
    k_emb, k_wih, k_whh, k_bih, k_bhh = jax.random.split(key, 5)
    bound = 1.0 / jnp.sqrt(hidden)
    u = lambda k, shape: jax.random.uniform(
        k, shape, dtype=jnp.float32, minval=-bound, maxval=bound)
    raw = {
        "embedding": jax.random.normal(k_emb, (vocab, hidden), dtype=jnp.float32),
        "w_ih": u(k_wih, (3 * hidden, hidden)),
        "w_hh": u(k_whh, (3 * hidden, hidden)),
        "b_ih": u(k_bih, (3 * hidden,)),
        "b_hh": u(k_bhh, (3 * hidden,)),
    }
    wx_folded, wh_packed, b_packed = pack_gru_params(
        raw["embedding"], raw["w_ih"], raw["w_hh"], raw["b_ih"], raw["b_hh"])
    params = {"wx_folded": wx_folded, "wh_packed": wh_packed, "b_packed": b_packed}
    return params, raw


def gru_reference(token_ids, h, raw):
    """Pure-JAX reference of PyTorch nn.Embedding + single-step nn.GRU."""
    H = h.shape[-1]
    x = jnp.take(raw["embedding"], token_ids, axis=0)
    gi = x @ raw["w_ih"].T + raw["b_ih"]
    gh = h @ raw["w_hh"].T + raw["b_hh"]
    r = jax.nn.sigmoid(gi[:, 0:H] + gh[:, 0:H])
    z = jax.nn.sigmoid(gi[:, H:2 * H] + gh[:, H:2 * H])
    n = jnp.tanh(gi[:, 2 * H:] + r * gh[:, 2 * H:])
    return (1.0 - z) * n + z * h


if __name__ == "__main__":
    key = jax.random.PRNGKey(0)
    k_params, k_tok1, k_tok2 = jax.random.split(key, 3)

    params, raw = init_params(k_params, VOCAB, HIDDEN)
    token_ids = jax.random.randint(k_tok1, (BATCH,), 0, VOCAB, dtype=jnp.int32)
    hidden0 = jnp.zeros((1, BATCH, HIDDEN), dtype=jnp.float32)   # initHidden

    fwd = jax.jit(encoder_rnn_forward)
    output, hidden = fwd(params, token_ids, hidden0)
    jax.block_until_ready((output, hidden))

    assert output.shape == (1, BATCH, HIDDEN)
    assert hidden.shape == (1, BATCH, HIDDEN)
    # Single-layer GRU, one timestep: output equals new hidden.
    assert bool(jnp.allclose(output, hidden))

    # Step 1 vs pure-JAX PyTorch-semantics reference (bf16 weights in-kernel,
    # f32 accumulation -> loose tolerance).
    ref1 = gru_reference(token_ids, hidden0[0], raw)
    assert bool(jnp.allclose(output[0], ref1, atol=3e-2, rtol=3e-2)), (
        float(jnp.max(jnp.abs(output[0] - ref1))))

    # Step 2 with a nonzero hidden state exercises the h-path matmul too.
    token_ids2 = jax.random.randint(k_tok2, (BATCH,), 0, VOCAB, dtype=jnp.int32)
    output2, hidden2 = fwd(params, token_ids2, hidden)
    jax.block_until_ready((output2, hidden2))
    ref2 = gru_reference(token_ids2, hidden[0], raw)
    assert bool(jnp.allclose(output2[0], ref2, atol=3e-2, rtol=3e-2)), (
        float(jnp.max(jnp.abs(output2[0] - ref2))))

    print("KERNEL_OK")
</pallas_src>

<mosaic_0001>
module attributes {stable_mosaic.version = 11 : i64} {
  func.func @encoder_gru_kernel(%arg0: memref<8x1xi32, #tpu.memory_space<vmem>>, %arg1: memref<8x128xf32, #tpu.memory_space<vmem>>, %arg2: memref<256x512xbf16, #tpu.memory_space<vmem>>, %arg3: memref<128x512xbf16, #tpu.memory_space<vmem>>, %arg4: memref<1x512xf32, #tpu.memory_space<vmem>>, %arg5: memref<8x128xf32, #tpu.memory_space<vmem>>) attributes {dimension_semantics = [], scalar_prefetch = 0 : i64, scratch_operands = 0 : i64, tpu.core_type = #tpu.core_type<tc>} {
    %c0 = arith.constant 0 : index
    %c0_0 = arith.constant 0 : index
    %0 = vector.load %arg1[%c0, %c0_0] : memref<8x128xf32, #tpu.memory_space<vmem>>, vector<8x128xf32>
    %1 = tpu.iota {dimensions = array<i32: 1>} : vector<8x256xi32>
    %c0_1 = arith.constant 0 : index
    %c0_2 = arith.constant 0 : index
    %2 = vector.load %arg0[%c0_1, %c0_2] : memref<8x1xi32, #tpu.memory_space<vmem>>, vector<8x1xi32>
    %3 = vector.broadcast %2 : vector<8x1xi32> to vector<8x256xi32>
    %4 = arith.cmpi eq, %1, %3 : vector<8x256xi32>
    %5 = arith.extui %4 : vector<8x256xi1> to vector<8x256xi32>
    %6 = arith.sitofp %5 : vector<8x256xi32> to vector<8x256xf32>
    %7 = arith.truncf %6 : vector<8x256xf32> to vector<8x256xbf16>
    %c0_3 = arith.constant 0 : index
    %c0_4 = arith.constant 0 : index
    %8 = vector.load %arg2[%c0_3, %c0_4] : memref<256x512xbf16, #tpu.memory_space<vmem>>, vector<256x512xbf16>
    %cst = arith.constant dense<0.000000e+00> : vector<8x512xf32>
    %9 = tpu.matmul %7, %8, %cst {dimension_numbers = #tpu.dot_dimension_numbers<[1], [0], [0], [1], [0, 0, 1, 1], [], []>} : vector<8x256xbf16>, vector<256x512xbf16>, vector<8x512xf32> -> vector<8x512xf32>
    %10 = arith.truncf %0 : vector<8x128xf32> to vector<8x128xbf16>
    %c0_5 = arith.constant 0 : index
    %c0_6 = arith.constant 0 : index
    %11 = vector.load %arg3[%c0_5, %c0_6] : memref<128x512xbf16, #tpu.memory_space<vmem>>, vector<128x512xbf16>
    %cst_7 = arith.constant dense<0.000000e+00> : vector<8x512xf32>
    %12 = tpu.matmul %10, %11, %cst_7 {dimension_numbers = #tpu.dot_dimension_numbers<[1], [0], [0], [1], [0, 0, 1, 1], [], []>} : vector<8x128xbf16>, vector<128x512xbf16>, vector<8x512xf32> -> vector<8x512xf32>
    %13 = arith.addf %9, %12 : vector<8x512xf32>
    %c0_8 = arith.constant 0 : index
    %c0_9 = arith.constant 0 : index
    %14 = vector.load %arg4[%c0_8, %c0_9] : memref<1x512xf32, #tpu.memory_space<vmem>>, vector<1x512xf32>
    %15 = vector.broadcast %14 : vector<1x512xf32> to vector<8x512xf32>
    %16 = arith.addf %13, %15 : vector<8x512xf32>
    %17 = vector.extract_strided_slice %16 {offsets = [0, 0], sizes = [8, 128], strides = [1, 1]} : vector<8x512xf32> to vector<8x128xf32>
    %18 = arith.negf %17 : vector<8x128xf32>
    %19 = math.exp %18 : vector<8x128xf32>
    %cst_10 = arith.constant 1.000000e+00 : f32
    %20 = vector.broadcast %cst_10 : f32 to vector<8x128xf32>
    %21 = arith.addf %20, %19 : vector<8x128xf32>
    %22 = arith.divf %20, %21 : vector<8x128xf32>
    %23 = vector.extract_strided_slice %16 {offsets = [0, 128], sizes = [8, 128], strides = [1, 1]} : vector<8x512xf32> to vector<8x128xf32>
    %24 = arith.negf %23 : vector<8x128xf32>
    %25 = math.exp %24 : vector<8x128xf32>
    %cst_11 = arith.constant 1.000000e+00 : f32
    %26 = vector.broadcast %cst_11 : f32 to vector<8x128xf32>
    %27 = arith.addf %26, %25 : vector<8x128xf32>
    %28 = arith.divf %26, %27 : vector<8x128xf32>
    %29 = vector.extract_strided_slice %16 {offsets = [0, 256], sizes = [8, 128], strides = [1, 1]} : vector<8x512xf32> to vector<8x128xf32>
    %30 = vector.extract_strided_slice %16 {offsets = [0, 384], sizes = [8, 128], strides = [1, 1]} : vector<8x512xf32> to vector<8x128xf32>
    %31 = arith.mulf %22, %30 : vector<8x128xf32>
    %32 = arith.addf %29, %31 : vector<8x128xf32>
    %33 = math.tanh %32 : vector<8x128xf32>
    %cst_12 = arith.constant 1.000000e+00 : f32
    %34 = vector.broadcast %cst_12 : f32 to vector<8x128xf32>
    %35 = arith.subf %34, %28 : vector<8x128xf32>
    %36 = arith.mulf %35, %33 : vector<8x128xf32>
    %37 = arith.mulf %28, %0 : vector<8x128xf32>
    %38 = arith.addf %36, %37 : vector<8x128xf32>
    %c0_13 = arith.constant 0 : index
    %c0_14 = arith.constant 0 : index
    %39 = vector.load %arg5[%c0_13, %c0_14] : memref<8x128xf32, #tpu.memory_space<vmem>>, vector<8x128xf32>
    tpu.vector_store %arg5[%c0_13, %c0_14], %38 {strides = array<i32>} : memref<8x128xf32, #tpu.memory_space<vmem>>, vector<8x128xf32>,
    return
  }
}

</mosaic_0001>

<llo_original>
// kernel: encoder_rnn_forward.1
$region0: #{encoder_rnn_forward.1}
  #allocation0 [shape = 'u32[]', space=smem, size = 0x4, offset = 0x4, fixed_abs, tag = 'smem constant byte address 0x4 - core index']
  #allocation1 [shape = 'u32[144,128]{1,0:T(1,128)}', space=vmem, size = 0x12000, scoped, tag = 'internal scratch']
  %s0 = inlined_call_operand.vmem [shape: s32[8,1], index: 0, kind: input, shape index: {}]
  %s1 = inlined_call_operand.vmem [shape: f32[8,128], index: 1, kind: input, shape index: {}, may-alias: {1,5}]
  %s2 = inlined_call_operand.hbm [shape: bf16[256,512], index: 2, kind: input, shape index: {}]
  %s3 = inlined_call_operand.hbm [shape: bf16[128,512], index: 3, kind: input, shape index: {}]
  %s4 = inlined_call_operand.vmem [shape: f32[1,512], index: 4, kind: input, shape index: {}]
  %s5 = inlined_call_operand.vmem [shape: f32[8,128], index: 5, kind: output, shape index: {}, may-alias: {1,5}]
  %s6 = sld [smem:[#allocation0]]
  $region38: #{encoder_rnn_forward.1} parent=0
    _
  %s8 = ssub.s32 1, %s6
  %s9 = scalar_select 0, %s8, %s6
  $region1: #{encoder_rnn_forward.1} parent=0
    #allocation2 [shape = 'u8[262144]{0}', space=vmem, size = 0x40000, scoped, tag = 'input window, operand 2, single buffered']
    #allocation3 [shape = 's32[1]{0}', space=sflag, size = 0x4, scoped, tag = 'scoped memory for encoder_rnn_forward.1']
    #allocation4 [shape = 'u8[131072]{0}', space=vmem, size = 0x20000, scoped, tag = 'input window, operand 3, single buffered']
    #allocation5 [shape = 's32[1]{0}', space=sflag, size = 0x4, scoped, tag = 'scoped memory for encoder_rnn_forward.1']
    %10 = vsyncpa [#allocation3], 0
    %11 = vsyncpa [#allocation5], 0
    // Predicated region
    $region2: #{encoder_rnn_forward.1} parent=1 // pred_check
      _
    $region3: #{encoder_rnn_forward.1} parent=1 // pred_check_branch
      %13 = sbr.rel (0) target = $region5
    $region4: #{encoder_rnn_forward.1} parent=1 // pred_region
      _
    $region5: #{encoder_rnn_forward.1} parent=1 // pred_fallthru
      _
    // Predicated region
    $region6: #{encoder_rnn_forward.1} parent=1 // pred_check
      _
    $region7: #{encoder_rnn_forward.1} parent=1 // pred_check_branch
      %15 = sbr.rel (0) target = $region9
    $region8: #{encoder_rnn_forward.1} parent=1 // pred_region
      _
    $region9: #{encoder_rnn_forward.1} parent=1 // pred_fallthru
      _
    // Predicated region
    $region10: #{encoder_rnn_forward.1} parent=1 // pred_check
      _
    $region11: #{encoder_rnn_forward.1} parent=1 // pred_check_branch
      %17 = sbr.rel (0) target = $region13
    $region12: #{encoder_rnn_forward.1} parent=1 // pred_region
      %s19 = ssub.s32 8192, 8192
      %20 = vsyncadd [#allocation3], %s19
      %s21 = sshll.u32 [#allocation2], 4
      %s22 = int_to_ptr.vmem [resolvable:$true] %s21
      %27 = dma.hbm_to_vmem [thread:$0]  %s2, 8192, %s22, [#allocation3], 256, 256, 16
    $region13: #{encoder_rnn_forward.1} parent=1 // pred_fallthru
      _
    // Predicated region
    $region14: #{encoder_rnn_forward.1} parent=1 // pred_check
      _
    $region15: #{encoder_rnn_forward.1} parent=1 // pred_check_branch
      %29 = sbr.rel (0) target = $region17
    $region16: #{encoder_rnn_forward.1} parent=1 // pred_region
      %s31 = ssub.s32 4096, 4096
      %32 = vsyncadd [#allocation5], %s31
      %s33 = sshll.u32 [#allocation4], 4
      %s34 = int_to_ptr.vmem [resolvable:$true] %s33
      %39 = dma.hbm_to_vmem [thread:$0]  %s3, 4096, %s34, [#allocation5], 256, 256, 16
    $region17: #{encoder_rnn_forward.1} parent=1 // pred_fallthru
      _
    // Predicated region
    $region18: #{encoder_rnn_forward.1} parent=1 // pred_check
      _
    $region19: #{encoder_rnn_forward.1} parent=1 // pred_check_branch
      %41 = sbr.rel (0) target = $region21
    $region20: #{encoder_rnn_forward.1} parent=1 // pred_region
      _
    $region21: #{encoder_rnn_forward.1} parent=1 // pred_fallthru
      _
    // Predicated region
    $region22: #{encoder_rnn_forward.1} parent=1 // pred_check
      _
    $region23: #{encoder_rnn_forward.1} parent=1 // pred_check_branch
      %43 = sbr.rel (0) target = $region25
    $region24: #{encoder_rnn_forward.1} parent=1 // pred_region
      %44 = dma.done [#allocation3], 8192
    $region25: #{encoder_rnn_forward.1} parent=1 // pred_fallthru
      _
    // Predicated region
    $region26: #{encoder_rnn_forward.1} parent=1 // pred_check
      _
    $region27: #{encoder_rnn_forward.1} parent=1 // pred_check_branch
      %46 = sbr.rel (0) target = $region29
    $region28: #{encoder_rnn_forward.1} parent=1 // pred_region
      %47 = dma.done [#allocation5], 4096
    $region29: #{encoder_rnn_forward.1} parent=1 // pred_fallthru
      _
    %v49 = vld [vmem:[%s1] sm:$0xff]
    %v50 = vlaneseq
    %v51 = vand.u32 %v50, 127
    %v52 = vadd.s32 %v51, 128
    %v53 = vld [vmem:[%s0] sm:$0xff]
    %54 = vset.pattern.permute.xlu0 0
    %55 = vperm.xlu0 %54, %v53
    %v56 = vpop.permute.xlu0 %55
    %vm57 = vcmp.eq.s32.totalorder %v51, %v56
    %vm58 = vcmp.eq.s32.totalorder %v52, %v56
    %v59 = vsel %vm57, 1, 0
    %v60 = vsel %vm58, 1, 0
    %v61 = vcvt.s32.f32 %v59
    %v62 = vcvt.s32.f32 %v60
    %v63 = vpack.c.bf16 %v61, %v61
    %v64 = vpack.c.bf16 %v62, %v62
    %v65 = vld [vmem:[#allocation2] sm:$0xff]
    %v66 = vld [vmem:[#allocation2 + $0x8] sm:$0xff]
    %v67 = vld [vmem:[#allocation2 + $0x10] sm:$0xff]
    %v68 = vld [vmem:[#allocation2 + $0x18] sm:$0xff]
    %v69 = vld [vmem:[#allocation2 + $0x20] sm:$0xff]
    %v70 = vld [vmem:[#allocation2 + $0x28] sm:$0xff]
    %v71 = vld [vmem:[#allocation2 + $0x30] sm:$0xff]
    %v72 = vld [vmem:[#allocation2 + $0x38] sm:$0xff]
    %v73 = vld [vmem:[#allocation2 + $0x40] sm:$0xff]
    %v74 = vld [vmem:[#allocation2 + $0x48] sm:$0xff]
    %v75 = vld [vmem:[#allocation2 + $0x50] sm:$0xff]
    %v76 = vld [vmem:[#allocation2 + $0x58] sm:$0xff]
    %v77 = vld [vmem:[#allocation2 + $0x60] sm:$0xff]
    %v78 = vld [vmem:[#allocation2 + $0x68] sm:$0xff]
    %v79 = vld [vmem:[#allocation2 + $0x70] sm:$0xff]
    %v80 = vld [vmem:[#allocation2 + $0x78] sm:$0xff]
    %v81 = vld [vmem:[#allocation2 + $0x80] sm:$0xff]
    %v82 = vld [vmem:[#allocation2 + $0x88] sm:$0xff]
    %v83 = vld [vmem:[#allocation2 + $0x90] sm:$0xff]
    %v84 = vld [vmem:[#allocation2 + $0x98] sm:$0xff]
    %v85 = vld [vmem:[#allocation2 + $0xa0] sm:$0xff]
    %v86 = vld [vmem:[#allocation2 + $0xa8] sm:$0xff]
    %v87 = vld [vmem:[#allocation2 + $0xb0] sm:$0xff]
    %v88 = vld [vmem:[#allocation2 + $0xb8] sm:$0xff]
    %v89 = vld [vmem:[#allocation2 + $0xc0] sm:$0xff]
    %v90 = vld [vmem:[#allocation2 + $0xc8] sm:$0xff]
    %v91 = vld [vmem:[#allocation2 + $0xd0] sm:$0xff]
    %v92 = vld [vmem:[#allocation2 + $0xd8] sm:$0xff]
    %v93 = vld [vmem:[#allocation2 + $0xe0] sm:$0xff]
    %v94 = vld [vmem:[#allocation2 + $0xe8] sm:$0xff]
    %v95 = vld [vmem:[#allocation2 + $0xf0] sm:$0xff]
    %v96 = vld [vmem:[#allocation2 + $0xf8] sm:$0xff]
    %v97 = vld [vmem:[#allocation2 + $0x100] sm:$0xff]
    %v98 = vld [vmem:[#allocation2 + $0x108] sm:$0xff]
    %v99 = vld [vmem:[#allocation2 + $0x110] sm:$0xff]
    %v100 = vld [vmem:[#allocation2 + $0x118] sm:$0xff]
    %v101 = vld [vmem:[#allocation2 + $0x120] sm:$0xff]
    %v102 = vld [vmem:[#allocation2 + $0x128] sm:$0xff]
    %v103 = vld [vmem:[#allocation2 + $0x130] sm:$0xff]
    %v104 = vld [vmem:[#allocation2 + $0x138] sm:$0xff]
    %v105 = vld [vmem:[#allocation2 + $0x140] sm:$0xff]
    %v106 = vld [vmem:[#allocation2 + $0x148] sm:$0xff]
    %v107 = vld [vmem:[#allocation2 + $0x150] sm:$0xff]
    %v108 = vld [vmem:[#allocation2 + $0x158] sm:$0xff]
    %v109 = vld [vmem:[#allocation2 + $0x160] sm:$0xff]
    %v110 = vld [vmem:[#allocation2 + $0x168] sm:$0xff]
    %v111 = vld [vmem:[#allocation2 + $0x170] sm:$0xff]
    %v112 = vld [vmem:[#allocation2 + $0x178] sm:$0xff]
    %v113 = vld [vmem:[#allocation2 + $0x180] sm:$0xff]
    %v114 = vld [vmem:[#allocation2 + $0x188] sm:$0xff]
    %v115 = vld [vmem:[#allocation2 + $0x190] sm:$0xff]
    %v116 = vld [vmem:[#allocation2 + $0x198] sm:$0xff]
    %v117 = vld [vmem:[#allocation2 + $0x1a0] sm:$0xff]
    %v118 = vld [vmem:[#allocation2 + $0x1a8] sm:$0xff]
    %v119 = vld [vmem:[#allocation2 + $0x1b0] sm:$0xff]
    %v120 = vld [vmem:[#allocation2 + $0x1b8] sm:$0xff]
    %v121 = vld [vmem:[#allocation2 + $0x1c0] sm:$0xff]
    %v122 = vld [vmem:[#allocation2 + $0x1c8] sm:$0xff]
    %v123 = vld [vmem:[#allocation2 + $0x1d0] sm:$0xff]
    %v124 = vld [vmem:[#allocation2 + $0x1d8] sm:$0xff]
    %v125 = vld [vmem:[#allocation2 + $0x1e0] sm:$0xff]
    %v126 = vld [vmem:[#allocation2 + $0x1e8] sm:$0xff]
    %v127 = vld [vmem:[#allocation2 + $0x1f0] sm:$0xff]
    %v128 = vld [vmem:[#allocation2 + $0x1f8] sm:$0xff]
    %v129 = vpack.c.bf16 %v49, %v49
    %v130 = vld [vmem:[#allocation4] sm:$0xff]
    %v131 = vld [vmem:[#allocation4 + $0x8] sm:$0xff]
    %v132 = vld [vmem:[#allocation4 + $0x10] sm:$0xff]
    %v133 = vld [vmem:[#allocation4 + $0x18] sm:$0xff]
    %v134 = vld [vmem:[#allocation4 + $0x20] sm:$0xff]
    %v135 = vld [vmem:[#allocation4 + $0x28] sm:$0xff]
    %v136 = vld [vmem:[#allocation4 + $0x30] sm:$0xff]
    %v137 = vld [vmem:[#allocation4 + $0x38] sm:$0xff]
    %v138 = vld [vmem:[#allocation4 + $0x40] sm:$0xff]
    %v139 = vld [vmem:[#allocation4 + $0x48] sm:$0xff]
    %v140 = vld [vmem:[#allocation4 + $0x50] sm:$0xff]
    %v141 = vld [vmem:[#allocation4 + $0x58] sm:$0xff]
    %v142 = vld [vmem:[#allocation4 + $0x60] sm:$0xff]
    %v143 = vld [vmem:[#allocation4 + $0x68] sm:$0xff]
    %v144 = vld [vmem:[#allocation4 + $0x70] sm:$0xff]
    %v145 = vld [vmem:[#allocation4 + $0x78] sm:$0xff]
    %v146 = vld [vmem:[#allocation4 + $0x80] sm:$0xff]
    %v147 = vld [vmem:[#allocation4 + $0x88] sm:$0xff]
    %v148 = vld [vmem:[#allocation4 + $0x90] sm:$0xff]
    %v149 = vld [vmem:[#allocation4 + $0x98] sm:$0xff]
    %v150 = vld [vmem:[#allocation4 + $0xa0] sm:$0xff]
    %v151 = vld [vmem:[#allocation4 + $0xa8] sm:$0xff]
    %v152 = vld [vmem:[#allocation4 + $0xb0] sm:$0xff]
    %v153 = vld [vmem:[#allocation4 + $0xb8] sm:$0xff]
    %v154 = vld [vmem:[#allocation4 + $0xc0] sm:$0xff]
    %v155 = vld [vmem:[#allocation4 + $0xc8] sm:$0xff]
    %v156 = vld [vmem:[#allocation4 + $0xd0] sm:$0xff]
    %v157 = vld [vmem:[#allocation4 + $0xd8] sm:$0xff]
    %v158 = vld [vmem:[#allocation4 + $0xe0] sm:$0xff]
    %v159 = vld [vmem:[#allocation4 + $0xe8] sm:$0xff]
    %v160 = vld [vmem:[#allocation4 + $0xf0] sm:$0xff]
    %v161 = vld [vmem:[#allocation4 + $0xf8] sm:$0xff]
    %v194 = vunpack.c.l.b16 %v130
    %v195 = vunpack.c.h.b16 %v130
    %v196 = vunpack.c.l.b16 %v131
    %v197 = vunpack.c.h.b16 %v131
    %v198 = vunpack.c.l.b16 %v132
    %v199 = vunpack.c.h.b16 %v132
    %v200 = vunpack.c.l.b16 %v133
    %v201 = vunpack.c.h.b16 %v133
    %v202 = vunpack.c.l.b16 %v134
    %v203 = vunpack.c.h.b16 %v134
    %v204 = vunpack.c.l.b16 %v135
    %v205 = vunpack.c.h.b16 %v135
    %v206 = vunpack.c.l.b16 %v136
    %v207 = vunpack.c.h.b16 %v136
    %v208 = vunpack.c.l.b16 %v137
    %v209 = vunpack.c.h.b16 %v137
    %v210 = vunpack.c.l.b16 %v138
    %v211 = vunpack.c.h.b16 %v138
    %v212 = vunpack.c.l.b16 %v139
    %v213 = vunpack.c.h.b16 %v139
    %v214 = vunpack.c.l.b16 %v140
    %v215 = vunpack.c.h.b16 %v140
    %v216 = vunpack.c.l.b16 %v141
    %v217 = vunpack.c.h.b16 %v141
    %v218 = vunpack.c.l.b16 %v142
    %v219 = vunpack.c.h.b16 %v142
    %v220 = vunpack.c.l.b16 %v143
    %v221 = vunpack.c.h.b16 %v143
    %v222 = vunpack.c.l.b16 %v144
    %v223 = vunpack.c.h.b16 %v144
    %v224 = vunpack.c.l.b16 %v145
    %v225 = vunpack.c.h.b16 %v145
    %v226 = vunpack.c.l.b16 %v146
    %v227 = vunpack.c.h.b16 %v146
    %v228 = vunpack.c.l.b16 %v147
    %v229 = vunpack.c.h.b16 %v147
    %v230 = vunpack.c.l.b16 %v148
    %v231 = vunpack.c.h.b16 %v148
    %v232 = vunpack.c.l.b16 %v149
    %v233 = vunpack.c.h.b16 %v149
    %v234 = vunpack.c.l.b16 %v150
    %v235 = vunpack.c.h.b16 %v150
    %v236 = vunpack.c.l.b16 %v151
    %v237 = vunpack.c.h.b16 %v151
    %v238 = vunpack.c.l.b16 %v152
    %v239 = vunpack.c.h.b16 %v152
    %v240 = vunpack.c.l.b16 %v153
    %v241 = vunpack.c.h.b16 %v153
    %v242 = vunpack.c.l.b16 %v154
    %v243 = vunpack.c.h.b16 %v154
    %v244 = vunpack.c.l.b16 %v155
    %v245 = vunpack.c.h.b16 %v155
    %v246 = vunpack.c.l.b16 %v156
    %v247 = vunpack.c.h.b16 %v156
    %v248 = vunpack.c.l.b16 %v157
    %v249 = vunpack.c.h.b16 %v157
    %v250 = vunpack.c.l.b16 %v158
    %v251 = vunpack.c.h.b16 %v158
    %v252 = vunpack.c.l.b16 %v159
    %v253 = vunpack.c.h.b16 %v159
    %v254 = vunpack.c.l.b16 %v160
    %v255 = vunpack.c.h.b16 %v160
    %v256 = vunpack.c.l.b16 %v161
    %v257 = vunpack.c.h.b16 %v161
    %v258 = vpack.c.b16 %v198, %v194
    %v259 = vpack.c.b16 %v199, %v195
    %v260 = vpack.c.b16 %v200, %v196
    %v261 = vpack.c.b16 %v201, %v197
    %v262 = vpack.c.b16 %v206, %v202
    %v263 = vpack.c.b16 %v207, %v203
    %v264 = vpack.c.b16 %v208, %v204
    %v265 = vpack.c.b16 %v209, %v205
    %v266 = vpack.c.b16 %v214, %v210
    %v267 = vpack.c.b16 %v215, %v211
    %v268 = vpack.c.b16 %v216, %v212
    %v269 = vpack.c.b16 %v217, %v213
    %v270 = vpack.c.b16 %v222, %v218
    %v271 = vpack.c.b16 %v223, %v219
    %v272 = vpack.c.b16 %v224, %v220
    %v273 = vpack.c.b16 %v225, %v221
    %v274 = vpack.c.b16 %v230, %v226
    %v275 = vpack.c.b16 %v231, %v227
    %v276 = vpack.c.b16 %v232, %v228
    %v277 = vpack.c.b16 %v233, %v229
    %v278 = vpack.c.b16 %v238, %v234
    %v279 = vpack.c.b16 %v239, %v235
    %v280 = vpack.c.b16 %v240, %v236
    %v281 = vpack.c.b16 %v241, %v237
    %v282 = vpack.c.b16 %v246, %v242
    %v283 = vpack.c.b16 %v247, %v243
    %v284 = vpack.c.b16 %v248, %v244
    %v285 = vpack.c.b16 %v249, %v245
    %v286 = vpack.c.b16 %v254, %v250
    %v287 = vpack.c.b16 %v255, %v251
    %v288 = vpack.c.b16 %v256, %v252
    %v289 = vpack.c.b16 %v257, %v253
    %322 = vmatprep.subr.bf16.mxu0 %v287
    %323 = vmatpush1.bf16.msra.mxu0 %v286
    %324 = vmatprep.subr.bf16.mxu0 %v283
    %325 = vmatpush1.bf16.msra.mxu0 %v282
    %326 = vmatprep.subr.bf16.mxu0 %v279
    %327 = vmatpush1.bf16.msra.mxu0 %v278
    %328 = vmatprep.subr.bf16.mxu0 %v275
    %329 = vmatpush1.bf16.msra.mxu0 %v274
    %330 = vmatprep.subr.bf16.mxu0 %v271
    %331 = vmatpush1.bf16.msra.mxu0 %v270
    %332 = vmatprep.subr.bf16.mxu0 %v267
    %333 = vmatpush1.bf16.msra.mxu0 %v266
    %334 = vmatprep.subr.bf16.mxu0 %v263
    %335 = vmatpush1.bf16.msra.mxu0 %v262
    %336 = vmatprep.subr.bf16.mxu0 %v259
    %337 = vmatpush1.bf16.msra.mxu0 %v258
    %338 = vmatprep.subr.bf16.mxu0 0
    %339 = vmatpush2.bf16.msra.mxu0 0
    %340 = vmatprep.subr.bf16.mxu0 0
    %341 = vmatpush2.bf16.msra.mxu0 0
    %342 = vmatprep.subr.bf16.mxu0 0
    %343 = vmatpush2.bf16.msra.mxu0 0
    %344 = vmatprep.subr.bf16.mxu0 0
    %345 = vmatpush2.bf16.msra.mxu0 0
    %346 = vmatprep.subr.bf16.mxu0 0
    %347 = vmatpush2.bf16.msra.mxu0 0
    %348 = vmatprep.subr.bf16.mxu0 0
    %349 = vmatpush2.bf16.msra.mxu0 0
    %350 = vmatprep.subr.bf16.mxu0 0
    %351 = vmatpush2.bf16.msra.mxu0 0
    %352 = vmatprep.subr.bf16.mxu0 0
    %353 = vmatpush2.bf16.msra.mxu0 0
    %354 = vmatprep.mubr.bf16.mxu0 0
    %355 = vmatmul.mubr.bf16.gmra.mxu0 %v129
    %v356 = vpop.f32.mrf.mxu0
    %v357 = vadd.f32 0.0, %v356
    %v358 = vpop.f32.mrf.mxu0
    %v359 = vadd.f32 0.0, %v358
    %v360 = vpop.f32.mrf.mxu0
    %v361 = vpop.f32.mrf.mxu0
    %362 = vdwg.mxu0
    %363 = vmatprep.subr.bf16.mxu0 %v289
    %364 = vmatpush1.bf16.msra.mxu0 %v288
    %365 = vmatprep.subr.bf16.mxu0 %v285
    %366 = vmatpush1.bf16.msra.mxu0 %v284
    %367 = vmatprep.subr.bf16.mxu0 %v281
    %368 = vmatpush1.bf16.msra.mxu0 %v280
    %369 = vmatprep.subr.bf16.mxu0 %v277
    %370 = vmatpush1.bf16.msra.mxu0 %v276
    %371 = vmatprep.subr.bf16.mxu0 %v273
    %372 = vmatpush1.bf16.msra.mxu0 %v272
    %373 = vmatprep.subr.bf16.mxu0 %v269
    %374 = vmatpush1.bf16.msra.mxu0 %v268
    %375 = vmatprep.subr.bf16.mxu0 %v265
    %376 = vmatpush1.bf16.msra.mxu0 %v264
    %377 = vmatprep.subr.bf16.mxu0 %v261
    %378 = vmatpush1.bf16.msra.mxu0 %v260
    %379 = vmatprep.subr.bf16.mxu0 0
    %380 = vmatpush2.bf16.msra.mxu0 0
    %381 = vmatprep.subr.bf16.mxu0 0
    %382 = vmatpush2.bf16.msra.mxu0 0
    %383 = vmatprep.subr.bf16.mxu0 0
    %384 = vmatpush2.bf16.msra.mxu0 0
    %385 = vmatprep.subr.bf16.mxu0 0
    %386 = vmatpush2.bf16.msra.mxu0 0
    %387 = vmatprep.subr.bf16.mxu0 0
    %388 = vmatpush2.bf16.msra.mxu0 0
    %389 = vmatprep.subr.bf16.mxu0 0
    %390 = vmatpush2.bf16.msra.mxu0 0
    %391 = vmatprep.subr.bf16.mxu0 0
    %392 = vmatpush2.bf16.msra.mxu0 0
    %393 = vmatprep.subr.bf16.mxu0 0
    %394 = vmatpush2.bf16.msra.mxu0 0
    %395 = vmatprep.mubr.bf16.mxu0 0
    %396 = vmatmul.mubr.bf16.gmra.mxu0 %v129
    %v397 = vpop.f32.mrf.mxu0
    %v398 = vadd.f32 0.0, %v397
    %v399 = vpop.f32.mrf.mxu0
    %v400 = vadd.f32 0.0, %v399
    %v401 = vpop.f32.mrf.mxu0
    %v402 = vpop.f32.mrf.mxu0
    %403 = vdwg.mxu0
    %v468 = vunpack.c.l.b16 %v65
    %v469 = vunpack.c.h.b16 %v65
    %v470 = vunpack.c.l.b16 %v66
    %v471 = vunpack.c.h.b16 %v66
    %v472 = vunpack.c.l.b16 %v67
    %v473 = vunpack.c.h.b16 %v67
    %v474 = vunpack.c.l.b16 %v68
    %v475 = vunpack.c.h.b16 %v68
    %v476 = vunpack.c.l.b16 %v69
    %v477 = vunpack.c.h.b16 %v69
    %v478 = vunpack.c.l.b16 %v70
    %v479 = vunpack.c.h.b16 %v70
    %v480 = vunpack.c.l.b16 %v71
    %v481 = vunpack.c.h.b16 %v71
    %v482 = vunpack.c.l.b16 %v72
    %v483 = vunpack.c.h.b16 %v72
    %v484 = vunpack.c.l.b16 %v73
    %v485 = vunpack.c.h.b16 %v73
    %v486 = vunpack.c.l.b16 %v74
    %v487 = vunpack.c.h.b16 %v74
    %v488 = vunpack.c.l.b16 %v75
    %v489 = vunpack.c.h.b16 %v75
    %v490 = vunpack.c.l.b16 %v76
    %v491 = vunpack.c.h.b16 %v76
    %v492 = vunpack.c.l.b16 %v77
    %v493 = vunpack.c.h.b16 %v77
    %v494 = vunpack.c.l.b16 %v78
    %v495 = vunpack.c.h.b16 %v78
    %v496 = vunpack.c.l.b16 %v79
    %v497 = vunpack.c.h.b16 %v79
    %v498 = vunpack.c.l.b16 %v80
    %v499 = vunpack.c.h.b16 %v80
    %v500 = vunpack.c.l.b16 %v81
    %v501 = vunpack.c.h.b16 %v81
    %v502 = vunpack.c.l.b16 %v82
    %v503 = vunpack.c.h.b16 %v82
    %v504 = vunpack.c.l.b16 %v83
    %v505 = vunpack.c.h.b16 %v83
    %v506 = vunpack.c.l.b16 %v84
    %v507 = vunpack.c.h.b16 %v84
    %v508 = vunpack.c.l.b16 %v85
    %v509 = vunpack.c.h.b16 %v85
    %v510 = vunpack.c.l.b16 %v86
    %v511 = vunpack.c.h.b16 %v86
    %v512 = vunpack.c.l.b16 %v87
    %v513 = vunpack.c.h.b16 %v87
    %v514 = vunpack.c.l.b16 %v88
    %v515 = vunpack.c.h.b16 %v88
    %v516 = vunpack.c.l.b16 %v89
    %v517 = vunpack.c.h.b16 %v89
    %v518 = vunpack.c.l.b16 %v90
    %v519 = vunpack.c.h.b16 %v90
    %v520 = vunpack.c.l.b16 %v91
    %v521 = vunpack.c.h.b16 %v91
    %v522 = vunpack.c.l.b16 %v92
    %v523 = vunpack.c.h.b16 %v92
    %v524 = vunpack.c.l.b16 %v93
    %v525 = vunpack.c.h.b16 %v93
    %v526 = vunpack.c.l.b16 %v94
    %v527 = vunpack.c.h.b16 %v94
    %v528 = vunpack.c.l.b16 %v95
    %v529 = vunpack.c.h.b16 %v95
    %v530 = vunpack.c.l.b16 %v96
    %v531 = vunpack.c.h.b16 %v96
    %v532 = vunpack.c.l.b16 %v97
    %v533 = vunpack.c.h.b16 %v97
    %v534 = vunpack.c.l.b16 %v98
    %v535 = vunpack.c.h.b16 %v98
    %v536 = vunpack.c.l.b16 %v99
    %v537 = vunpack.c.h.b16 %v99
    %v538 = vunpack.c.l.b16 %v100
    %v539 = vunpack.c.h.b16 %v100
    %v540 = vunpack.c.l.b16 %v101
    %v541 = vunpack.c.h.b16 %v101
    %v542 = vunpack.c.l.b16 %v102
    %v543 = vunpack.c.h.b16 %v102
    %v544 = vunpack.c.l.b16 %v103
    %v545 = vunpack.c.h.b16 %v103
    %v546 = vunpack.c.l.b16 %v104
    %v547 = vunpack.c.h.b16 %v104
    %v548 = vunpack.c.l.b16 %v105
    %v549 = vunpack.c.h.b16 %v105
    %v550 = vunpack.c.l.b16 %v106
    %v551 = vunpack.c.h.b16 %v106
    %v552 = vunpack.c.l.b16 %v107
    %v553 = vunpack.c.h.b16 %v107
    %v554 = vunpack.c.l.b16 %v108
    %v555 = vunpack.c.h.b16 %v108
    %v556 = vunpack.c.l.b16 %v109
    %v557 = vunpack.c.h.b16 %v109
    %v558 = vunpack.c.l.b16 %v110
    %v559 = vunpack.c.h.b16 %v110
    %v560 = vunpack.c.l.b16 %v111
    %v561 = vunpack.c.h.b16 %v111
    %v562 = vunpack.c.l.b16 %v112
    %v563 = vunpack.c.h.b16 %v112
    %v564 = vunpack.c.l.b16 %v113
    %v565 = vunpack.c.h.b16 %v113
    %v566 = vunpack.c.l.b16 %v114
    %v567 = vunpack.c.h.b16 %v114
    %v568 = vunpack.c.l.b16 %v115
    %v569 = vunpack.c.h.b16 %v115
    %v570 = vunpack.c.l.b16 %v116
    %v571 = vunpack.c.h.b16 %v116
    %v572 = vunpack.c.l.b16 %v117
    %v573 = vunpack.c.h.b16 %v117
    %v574 = vunpack.c.l.b16 %v118
    %v575 = vunpack.c.h.b16 %v118
    %v576 = vunpack.c.l.b16 %v119
    %v577 = vunpack.c.h.b16 %v119
    %v578 = vunpack.c.l.b16 %v120
    %v579 = vunpack.c.h.b16 %v120
    %v580 = vunpack.c.l.b16 %v121
    %v581 = vunpack.c.h.b16 %v121
    %v582 = vunpack.c.l.b16 %v122
    %v583 = vunpack.c.h.b16 %v122
    %v584 = vunpack.c.l.b16 %v123
    %v585 = vunpack.c.h.b16 %v123
    %v586 = vunpack.c.l.b16 %v124
    %v587 = vunpack.c.h.b16 %v124
    %v588 = vunpack.c.l.b16 %v125
    %v589 = vunpack.c.h.b16 %v125
    %v590 = vunpack.c.l.b16 %v126
    %v591 = vunpack.c.h.b16 %v126
    %v592 = vunpack.c.l.b16 %v127
    %v593 = vunpack.c.h.b16 %v127
    %v594 = vunpack.c.l.b16 %v128
    %v595 = vunpack.c.h.b16 %v128
    %v596 = vpack.c.b16 %v472, %v468
    %v597 = vpack.c.b16 %v473, %v469
    %v598 = vpack.c.b16 %v474, %v470
    %v599 = vpack.c.b16 %v475, %v471
    %v600 = vpack.c.b16 %v480, %v476
    %v601 = vpack.c.b16 %v481, %v477
    %v602 = vpack.c.b16 %v482, %v478
    %v603 = vpack.c.b16 %v483, %v479
    %v604 = vpack.c.b16 %v488, %v484
    %v605 = vpack.c.b16 %v489, %v485
    %v606 = vpack.c.b16 %v490, %v486
    %v607 = vpack.c.b16 %v491, %v487
    %v608 = vpack.c.b16 %v496, %v492
    %v609 = vpack.c.b16 %v497, %v493
    %v610 = vpack.c.b16 %v498, %v494
    %v611 = vpack.c.b16 %v499, %v495
    %v612 = vpack.c.b16 %v504, %v500
    %v613 = vpack.c.b16 %v505, %v501
    %v614 = vpack.c.b16 %v506, %v502
    %v615 = vpack.c.b16 %v507, %v503
    %v616 = vpack.c.b16 %v512, %v508
    %v617 = vpack.c.b16 %v513, %v509
    %v618 = vpack.c.b16 %v514, %v510
    %v619 = vpack.c.b16 %v515, %v511
    %v620 = vpack.c.b16 %v520, %v516
    %v621 = vpack.c.b16 %v521, %v517
    %v622 = vpack.c.b16 %v522, %v518
    %v623 = vpack.c.b16 %v523, %v519
    %v624 = vpack.c.b16 %v528, %v524
    %v625 = vpack.c.b16 %v529, %v525
    %v626 = vpack.c.b16 %v530, %v526
    %v627 = vpack.c.b16 %v531, %v527
    %v628 = vpack.c.b16 %v536, %v532
    %v629 = vpack.c.b16 %v537, %v533
    %v630 = vpack.c.b16 %v538, %v534
    %v631 = vpack.c.b16 %v539, %v535
    %v632 = vpack.c.b16 %v544, %v540
    %v633 = vpack.c.b16 %v545, %v541
    %v634 = vpack.c.b16 %v546, %v542
    %v635 = vpack.c.b16 %v547, %v543
    %v636 = vpack.c.b16 %v552, %v548
    %v637 = vpack.c.b16 %v553, %v549
    %v638 = vpack.c.b16 %v554, %v550
    %v639 = vpack.c.b16 %v555, %v551
    %v640 = vpack.c.b16 %v560, %v556
    %v641 = vpack.c.b16 %v561, %v557
    %v642 = vpack.c.b16 %v562, %v558
    %v643 = vpack.c.b16 %v563, %v559
    %v644 = vpack.c.b16 %v568, %v564
    %v645 = vpack.c.b16 %v569, %v565
    %v646 = vpack.c.b16 %v570, %v566
    %v647 = vpack.c.b16 %v571, %v567
    %v648 = vpack.c.b16 %v576, %v572
    %v649 = vpack.c.b16 %v577, %v573
    %v650 = vpack.c.b16 %v578, %v574
    %v651 = vpack.c.b16 %v579, %v575
    %v652 = vpack.c.b16 %v584, %v580
    %v653 = vpack.c.b16 %v585, %v581
    %v654 = vpack.c.b16 %v586, %v582
    %v655 = vpack.c.b16 %v587, %v583
    %v656 = vpack.c.b16 %v592, %v588
    %v657 = vpack.c.b16 %v593, %v589
    %v658 = vpack.c.b16 %v594, %v590
    %v659 = vpack.c.b16 %v595, %v591
    %724 = vmatprep.subr.bf16.mxu0 %v625
    %725 = vmatpush1.bf16.msra.mxu0 %v624
    %726 = vmatprep.subr.bf16.mxu0 %v621
    %727 = vmatpush1.bf16.msra.mxu0 %v620
    %728 = vmatprep.subr.bf16.mxu0 %v617
    %729 = vmatpush1.bf16.msra.mxu0 %v616
    %730 = vmatprep.subr.bf16.mxu0 %v613
    %731 = vmatpush1.bf16.msra.mxu0 %v612
    %732 = vmatprep.subr.bf16.mxu0 %v609
    %733 = vmatpush1.bf16.msra.mxu0 %v608
    %734 = vmatprep.subr.bf16.mxu0 %v605
    %735 = vmatpush1.bf16.msra.mxu0 %v604
    %736 = vmatprep.subr.bf16.mxu0 %v601
    %737 = vmatpush1.bf16.msra.mxu0 %v600
    %738 = vmatprep.subr.bf16.mxu0 %v597
    %739 = vmatpush1.bf16.msra.mxu0 %v596
    %740 = vmatprep.subr.bf16.mxu0 %v657
    %741 = vmatpush2.bf16.msra.mxu0 %v656
    %742 = vmatprep.subr.bf16.mxu0 %v653
    %743 = vmatpush2.bf16.msra.mxu0 %v652
    %744 = vmatprep.subr.bf16.mxu0 %v649
    %745 = vmatpush2.bf16.msra.mxu0 %v648
    %746 = vmatprep.subr.bf16.mxu0 %v645
    %747 = vmatpush2.bf16.msra.mxu0 %v644
    %748 = vmatprep.subr.bf16.mxu0 %v641
    %749 = vmatpush2.bf16.msra.mxu0 %v640
    %750 = vmatprep.subr.bf16.mxu0 %v637
    %751 = vmatpush2.bf16.msra.mxu0 %v636
    %752 = vmatprep.subr.bf16.mxu0 %v633
    %753 = vmatpush2.bf16.msra.mxu0 %v632
    %754 = vmatprep.subr.bf16.mxu0 %v629
    %755 = vmatpush2.bf16.msra.mxu0 %v628
    %756 = vmatprep.mubr.bf16.mxu0 %v64
    %757 = vmatmul.mubr.bf16.gmra.mxu0 %v63
    %v758 = vpop.f32.mrf.mxu0
    %v759 = vadd.f32 %v357, %v758
    %v760 = vpop.f32.mrf.mxu0
    %v761 = vadd.f32 %v359, %v760
    %v762 = vpop.f32.mrf.mxu0
    %v763 = vpop.f32.mrf.mxu0
    %764 = vdwg.mxu0
    %765 = vmatprep.subr.bf16.mxu0 %v627
    %766 = vmatpush1.bf16.msra.mxu0 %v626
    %767 = vmatprep.subr.bf16.mxu0 %v623
    %768 = vmatpush1.bf16.msra.mxu0 %v622
    %769 = vmatprep.subr.bf16.mxu0 %v619
    %770 = vmatpush1.bf16.msra.mxu0 %v618
    %771 = vmatprep.subr.bf16.mxu0 %v615
    %772 = vmatpush1.bf16.msra.mxu0 %v614
    %773 = vmatprep.subr.bf16.mxu0 %v611
    %774 = vmatpush1.bf16.msra.mxu0 %v610
    %775 = vmatprep.subr.bf16.mxu0 %v607
    %776 = vmatpush1.bf16.msra.mxu0 %v606
    %777 = vmatprep.subr.bf16.mxu0 %v603
    %778 = vmatpush1.bf16.msra.mxu0 %v602
    %779 = vmatprep.subr.bf16.mxu0 %v599
    %780 = vmatpush1.bf16.msra.mxu0 %v598
    %781 = vmatprep.subr.bf16.mxu0 %v659
    %782 = vmatpush2.bf16.msra.mxu0 %v658
    %783 = vmatprep.subr.bf16.mxu0 %v655
    %784 = vmatpush2.bf16.msra.mxu0 %v654
    %785 = vmatprep.subr.bf16.mxu0 %v651
    %786 = vmatpush2.bf16.msra.mxu0 %v650
    %787 = vmatprep.subr.bf16.mxu0 %v647
    %788 = vmatpush2.bf16.msra.mxu0 %v646
    %789 = vmatprep.subr.bf16.mxu0 %v643
    %790 = vmatpush2.bf16.msra.mxu0 %v642
    %791 = vmatprep.subr.bf16.mxu0 %v639
    %792 = vmatpush2.bf16.msra.mxu0 %v638
    %793 = vmatprep.subr.bf16.mxu0 %v635
    %794 = vmatpush2.bf16.msra.mxu0 %v634
    %795 = vmatprep.subr.bf16.mxu0 %v631
    %796 = vmatpush2.bf16.msra.mxu0 %v630
    %797 = vmatprep.mubr.bf16.mxu0 %v64
    %798 = vmatmul.mubr.bf16.gmra.mxu0 %v63
    %v799 = vpop.f32.mrf.mxu0
    %v800 = vadd.f32 %v398, %v799
    %v801 = vpop.f32.mrf.mxu0
    %v802 = vadd.f32 %v400, %v801
    %v803 = vpop.f32.mrf.mxu0
    %v804 = vpop.f32.mrf.mxu0
    %805 = vdwg.mxu0
    %v806 = vld [vmem:[%s4] sm:$0xf]
    %v808 = vlaneseq
    %v809 = vshrl.u32 %v808, 7
    %v810 = vsub.s32 0, %v809
    %v811 = vrot.slane %v806, %v810
    %v812 = vlaneseq
    %v813 = vshrl.u32 %v812, 7
    %v814 = vsub.s32 1, %v813
    %v815 = vrot.slane %v806, %v814
    %v816 = vlaneseq
    %v817 = vshrl.u32 %v816, 7
    %v818 = vsub.s32 2, %v817
    %v819 = vrot.slane %v806, %v818
    %v820 = vlaneseq
    %v821 = vshrl.u32 %v820, 7
    %v822 = vsub.s32 3, %v821
    %v823 = vrot.slane %v806, %v822
    %v828 = vadd.f32 %v759, %v811
    %v829 = vadd.f32 %v761, %v815
    %v830 = vadd.f32 %v800, %v819
    %v831 = vadd.f32 %v802, %v823
    %v832 = vxor.u32 %v828, 2147483648
    %v833 = vmul.f32 %v832, 1.442695
    %v834 = vpow.pop %v833
    %v835 = vadd.f32 %v834, 1.0
    %v836 = vrcp.pop %v835
    %v837 = vmul.f32 1.0, %v836
    %v838 = vxor.u32 %v829, 2147483648
    %v839 = vmul.f32 %v838, 1.442695
    %v840 = vpow.pop %v839
    %v841 = vadd.f32 %v840, 1.0
    %v842 = vrcp.pop %v841
    %v843 = vmul.f32 1.0, %v842
    %v844 = vmul.f32 %v837, %v831
    %v845 = vadd.f32 %v830, %v844
    %v846 = vtanh.pop %v845
    %v847 = vsub.f32 1.0, %v843
    %v848 = vmul.f32 %v847, %v846
    %v849 = vmul.f32 %v843, %v49
    %v850 = vadd.f32 %v848, %v849
    %851 = vst [vmem:[%s5] sm:$0xff] %v850
    // Predicated region
    $region30: #{encoder_rnn_forward.1} parent=1 // pred_check
      _
    $region31: #{encoder_rnn_forward.1} parent=1 // pred_check_branch
      %853 = sbr.rel (0) target = $region33
    $region32: #{encoder_rnn_forward.1} parent=1 // pred_region
      _
    $region33: #{encoder_rnn_forward.1} parent=1 // pred_fallthru
      _
    // Predicated region
    $region34: #{encoder_rnn_forward.1} parent=1 // pred_check
      _
    $region35: #{encoder_rnn_forward.1} parent=1 // pred_check_branch
      %855 = sbr.rel (0) target = $region37
    $region36: #{encoder_rnn_forward.1} parent=1 // pred_region
      _
    $region37: #{encoder_rnn_forward.1} parent=1 // pred_fallthru
      _
    %856 = vsyncpa [#allocation3], 1
    %857 = vsyncpa [#allocation5], 1

</llo_original>
